<compile_context>
chip_gen: v7x
topology: tpu7x:2x2x1
jax: 0.10.0
libtpu: 0.0.40
codegen_flags: <defaults>
</compile_context>

<pallas_src>
import functools

import jax
import jax.numpy as jnp
from jax.experimental import pallas as pl
from jax.experimental.pallas import tpu as pltpu


# ---------------------------------------------------------------------------
# DyReLU application kernel:  out = max_j ( a_j * x + b_j )  per row block.
# ---------------------------------------------------------------------------
def _dyrelu_kernel(x_ref, p_ref, o_ref, *, k):
    """x_ref: (TR, HW) feature rows (HW on lanes).
    p_ref: (TR, 2k) per-row params laid out [a_0..a_{k-1}, b_0..b_{k-1}]."""
    xf = x_ref[...].astype(jnp.float32)
    p = p_ref[...].astype(jnp.float32)        # one narrow load per block
    # Candidate affine maps are unrolled at trace time: each (TR, 1) column
    # slice + lane-broadcast happens exactly once per block and is free filler
    # under the HBM-bound DMA of the (TR, HW) tiles.
    out = xf * p[:, 0:1] + p[:, k:k + 1]
    for j in range(1, k):
        out = jnp.maximum(out, xf * p[:, j:j + 1] + p[:, k + j:k + j + 1])
    o_ref[...] = out.astype(o_ref.dtype)      # explicit cast (bf16-safe)


def _pick_row_tile(rows, row_bytes, target_tile_bytes=2 << 20):
    """Largest multiple-of-8 row count dividing `rows`, near the byte target."""
    if rows % 8 != 0:
        return rows                            # full-extent block (always legal)
    tr = max(8, min(rows, (target_tile_bytes // max(row_bytes, 1)) // 8 * 8))
    while rows % tr != 0:                      # keep the grid exact
        tr -= 8
    # Give v7x's two TensorCores at least two parallel blocks when possible.
    if rows // tr == 1 and rows % 16 == 0:
        tr = rows // 2
    return tr


def dyrelu_forward(feature_map, tokens, attn_map,
                   w1, b1, w2, b2, gamma, beta, coef, const, *, k=2):
    del attn_map  # unused in 'shared' mode
    B, C, H, W = feature_map.shape
    HW = H * W
    rows = B * C

    # ---- projection MLP + coef/const affine (tiny; plain XLA) --------------
    hp = jax.lax.Precision.HIGHEST
    tok0 = tokens[:, 0, :].astype(jnp.float32)                    # (B, D)
    h = jax.nn.gelu(jnp.dot(tok0, w1, precision=hp) + b1, approximate=False)
    y = jax.nn.gelu(jnp.dot(h, w2, precision=hp) + b2, approximate=False)
    # dropout: identity at eval
    mean = jnp.mean(y, axis=-1, keepdims=True)                    # LayerNorm
    var = jnp.mean(jnp.square(y - mean), axis=-1, keepdims=True)
    y = (y - mean) * jax.lax.rsqrt(var + 1e-5) * gamma + beta
    dy = y.reshape(B, C, 2 * k) * coef + const                    # (B, C, 2k)
    # (B*C, 2k): row axis aligned with the flattened feature rows below.
    params = dy.reshape(rows, 2 * k).astype(jnp.float32)

    # ---- DyReLU application (single pallas_call) ---------------------------
    # Lane-dense layout: rows on sublanes, H*W (multiple of 128 here) on lanes.
    # (Optionally cast x to bf16 here to halve HBM traffic if tolerance allows.)
    x = feature_map.reshape(rows, HW)
    tr = _pick_row_tile(rows, HW * x.dtype.itemsize)

    out = pl.pallas_call(
        functools.partial(_dyrelu_kernel, k=k),
        out_shape=jax.ShapeDtypeStruct((rows, HW), feature_map.dtype),
        grid=(rows // tr,),
        in_specs=[
            pl.BlockSpec((tr, HW), lambda i: (i, 0)),
            pl.BlockSpec((tr, 2 * k), lambda i: (i, 0)),
        ],
        out_specs=pl.BlockSpec((tr, HW), lambda i: (i, 0)),
        compiler_params=pltpu.CompilerParams(
            dimension_semantics=("parallel",),
            vmem_limit_bytes=32 * 1024 * 1024,
        ),
    )(x, params)

    return out.reshape(B, C, H, W)


if __name__ == "__main__":
    # Small deterministic setup consistent with the module.
    B, M, D = 2, 8, 32
    C, H, W = 4, 16, 16
    heads = 2
    k = 2
    reduce = 4
    Dh = D // reduce                 # hidden of projection MLP
    Mid = 2 * k * C                  # mid_channels

    key = jax.random.PRNGKey(0)
    k0, k1, k2, k3, k4 = jax.random.split(key, 5)

    feature_map = jax.random.normal(k0, (B, C, H, W), jnp.float32)
    tokens = jax.random.normal(k1, (B, M, D), jnp.float32)
    attn_map = jax.random.normal(k2, (B, heads, H * W, M), jnp.float32)

    # Deterministic parameter init (synthetic weights).
    w1 = jax.random.normal(k3, (D, Dh), jnp.float32) * 0.02
    b1 = jnp.zeros((Dh,), jnp.float32)
    w2 = jax.random.normal(k4, (Dh, Mid), jnp.float32) * 0.02
    b2 = jnp.zeros((Mid,), jnp.float32)
    gamma = jnp.ones((Mid,), jnp.float32)   # LayerNorm weight
    beta = jnp.zeros((Mid,), jnp.float32)   # LayerNorm bias
    coef = jnp.array([1.0] * k + [0.5] * k, jnp.float32)         # (2k,)
    const = jnp.array([1.0] + [0.0] * (2 * k - 1), jnp.float32)  # (2k,)

    out = dyrelu_forward(feature_map, tokens, attn_map,
                         w1, b1, w2, b2, gamma, beta, coef, const, k=k)
    out = jax.block_until_ready(out)
    assert out.shape == (B, C, H, W), out.shape
    assert jnp.all(jnp.isfinite(out))

    # Pure-JAX reference for the DyReLU application (same MLP path).
    hp = jax.lax.Precision.HIGHEST
    tok0 = tokens[:, 0, :]
    h = jax.nn.gelu(jnp.dot(tok0, w1, precision=hp) + b1, approximate=False)
    y = jax.nn.gelu(jnp.dot(h, w2, precision=hp) + b2, approximate=False)
    mean = jnp.mean(y, axis=-1, keepdims=True)
    var = jnp.mean(jnp.square(y - mean), axis=-1, keepdims=True)
    y = (y - mean) * jax.lax.rsqrt(var + 1e-5) * gamma + beta
    dy = y.reshape(B, C, 2 * k) * coef + const
    a = dy[..., :k][..., None, None, :]          # (B, C, 1, 1, k)
    b = dy[..., k:][..., None, None, :]
    ref = jnp.max(feature_map[..., None] * a + b, axis=-1)
    assert jnp.allclose(out, ref, atol=1e-5, rtol=1e-5)

    print("KERNEL_OK")
</pallas_src>

<mosaic_0001>
module attributes {stable_mosaic.version = 11 : i64} {
  func.func @_dyrelu_kernel(%arg0: i32, %arg1: memref<8x256xf32, #tpu.memory_space<vmem>>, %arg2: memref<8x4xf32, #tpu.memory_space<vmem>>, %arg3: memref<8x256xf32, #tpu.memory_space<vmem>>) attributes {dimension_semantics = [#tpu.dimension_semantics<parallel>], iteration_bounds = array<i64: 1>, scalar_prefetch = 0 : i64, scratch_operands = 0 : i64, tpu.core_type = #tpu.core_type<tc>, window_params = [{transform_indices = @transform_0, window_bounds = array<i64: 8, 256>}, {transform_indices = @transform_1, window_bounds = array<i64: 8, 4>}, {transform_indices = @transform_2, window_bounds = array<i64: 8, 256>}]} {
    %c0 = arith.constant 0 : index
    %c0_0 = arith.constant 0 : index
    %0 = vector.load %arg1[%c0, %c0_0] : memref<8x256xf32, #tpu.memory_space<vmem>>, vector<8x256xf32>
    %c0_1 = arith.constant 0 : index
    %c0_2 = arith.constant 0 : index
    %1 = vector.load %arg2[%c0_1, %c0_2] : memref<8x4xf32, #tpu.memory_space<vmem>>, vector<8x4xf32>
    %2 = vector.extract_strided_slice %1 {offsets = [0, 0], sizes = [8, 1], strides = [1, 1]} : vector<8x4xf32> to vector<8x1xf32>
    %3 = vector.broadcast %2 : vector<8x1xf32> to vector<8x256xf32>
    %4 = arith.mulf %0, %3 : vector<8x256xf32>
    %5 = vector.extract_strided_slice %1 {offsets = [0, 2], sizes = [8, 1], strides = [1, 1]} : vector<8x4xf32> to vector<8x1xf32>
    %6 = vector.broadcast %5 : vector<8x1xf32> to vector<8x256xf32>
    %7 = arith.addf %4, %6 : vector<8x256xf32>
    %8 = vector.extract_strided_slice %1 {offsets = [0, 1], sizes = [8, 1], strides = [1, 1]} : vector<8x4xf32> to vector<8x1xf32>
    %9 = vector.broadcast %8 : vector<8x1xf32> to vector<8x256xf32>
    %10 = arith.mulf %0, %9 : vector<8x256xf32>
    %11 = vector.extract_strided_slice %1 {offsets = [0, 3], sizes = [8, 1], strides = [1, 1]} : vector<8x4xf32> to vector<8x1xf32>
    %12 = vector.broadcast %11 : vector<8x1xf32> to vector<8x256xf32>
    %13 = arith.addf %10, %12 : vector<8x256xf32>
    %14 = arith.maximumf %7, %13 : vector<8x256xf32>
    %c0_3 = arith.constant 0 : index
    %c0_4 = arith.constant 0 : index
    %15 = vector.load %arg3[%c0_3, %c0_4] : memref<8x256xf32, #tpu.memory_space<vmem>>, vector<8x256xf32>
    tpu.vector_store %arg3[%c0_3, %c0_4], %14 {strides = array<i32>} : memref<8x256xf32, #tpu.memory_space<vmem>>, vector<8x256xf32>,
    return
  }
  func.func @transform_0(%arg0: i32) -> (i32, i32) {
    %c0_i32 = arith.constant 0 : i32
    %c0_i32_0 = arith.constant 0 : i32
    return %arg0, %c0_i32 : i32, i32
  }
  func.func @transform_1(%arg0: i32) -> (i32, i32) {
    %c0_i32 = arith.constant 0 : i32
    %c0_i32_0 = arith.constant 0 : i32
    return %arg0, %c0_i32 : i32, i32
  }
  func.func @transform_2(%arg0: i32) -> (i32, i32) {
    %c0_i32 = arith.constant 0 : i32
    %c0_i32_0 = arith.constant 0 : i32
    return %arg0, %c0_i32 : i32, i32
  }
}

</mosaic_0001>

<llo_original>
// kernel: tpu_custom_call.1
$region0: #{tpu_custom_call.1}
  #allocation0 [shape = 'u32[]', space=smem, size = 0x4, offset = 0x4, fixed_abs, tag = 'smem constant byte address 0x4 - core index']
  #allocation1 [shape = 'u32[144,128]{1,0:T(1,128)}', space=vmem, size = 0x12000, scoped, tag = 'internal scratch']
  %s0 = inlined_call_operand.hbm [shape: f32[8,256], index: 0, kind: input, shape index: {}]
  %s1 = inlined_call_operand.vmem [shape: f32[8,4], index: 1, kind: input, shape index: {}]
  %s2 = inlined_call_operand.hbm [shape: f32[8,256], index: 2, kind: output, shape index: {}]
  %s3 = sld [smem:[#allocation0]]
  $region22: #{tpu_custom_call.1} parent=0
    _
  %s5 = ssub.s32 1, %s3
  %s6 = scalar_select 0, %s5, %s3
  $region1: #{tpu_custom_call.1} parent=0
    #allocation2 [shape = 'u8[8192]{0}', space=vmem, size = 0x2000, scoped, tag = 'input window, operand 0, single buffered']
    #allocation3 [shape = 's32[1]{0}', space=sflag, size = 0x4, scoped, tag = 'scoped memory for tpu_custom_call.1']
    #allocation4 [shape = 's32[1]{0}', space=sflag, size = 0x4, scoped, tag = 'scoped memory for tpu_custom_call.1']
    #allocation5 [shape = 'u8[8192]{0}', space=vmem, size = 0x2000, scoped, tag = 'output window, operand 0, single buffered']
    %7 = vsyncpa [#allocation3], 0
    %8 = vsyncpa [#allocation4], 0
    // Predicated region
    $region2: #{tpu_custom_call.1} parent=1 // pred_check
      _
    $region3: #{tpu_custom_call.1} parent=1 // pred_check_branch
      %10 = sbr.rel (0) target = $region5
    $region4: #{tpu_custom_call.1} parent=1 // pred_region
      %s12 = ssub.s32 256, 256
      %13 = vsyncadd [#allocation3], %s12
      %s15 = sshll.u32 [#allocation2], 4
      %s16 = int_to_ptr.vmem [resolvable:$true] %s15
      %18 = dma.hbm_to_vmem [thread:$0]  %s0, 256, %s16, [#allocation3]
    $region5: #{tpu_custom_call.1} parent=1 // pred_fallthru
      _
    // Predicated region
    $region6: #{tpu_custom_call.1} parent=1 // pred_check
      _
    $region7: #{tpu_custom_call.1} parent=1 // pred_check_branch
      %20 = sbr.rel (0) target = $region9
    $region8: #{tpu_custom_call.1} parent=1 // pred_region
      _
    $region9: #{tpu_custom_call.1} parent=1 // pred_fallthru
      _
    // Predicated region
    $region10: #{tpu_custom_call.1} parent=1 // pred_check
      _
    $region11: #{tpu_custom_call.1} parent=1 // pred_check_branch
      %22 = sbr.rel (0) target = $region13
    $region12: #{tpu_custom_call.1} parent=1 // pred_region
      %23 = dma.done [#allocation3], 256
    $region13: #{tpu_custom_call.1} parent=1 // pred_fallthru
      _
    %v24 = vld [vmem:[#allocation2] sm:$0xff]
    %v25 = vld [vmem:[#allocation2 + $0x8] sm:$0xff]
    %v26 = vld [vmem:[%s1] sm:$0xff]
    %28 = vset.pattern.permute.xlu0 0
    %29 = vperm.xlu0 %28, %v26
    %v30 = vpop.permute.xlu0 %29
    %v32 = vmul.f32 %v24, %v30
    %v33 = vmul.f32 %v25, %v30
    %34 = vset.pattern.permute.xlu0 2
    %35 = vperm.xlu0 %34, %v26
    %v36 = vpop.permute.xlu0 %35
    %v38 = vadd.f32 %v32, %v36
    %v39 = vadd.f32 %v33, %v36
    %40 = vset.pattern.permute.xlu0 1
    %41 = vperm.xlu0 %40, %v26
    %v42 = vpop.permute.xlu0 %41
    %v44 = vmul.f32 %v24, %v42
    %v45 = vmul.f32 %v25, %v42
    %46 = vset.pattern.permute.xlu0 3
    %47 = vperm.xlu0 %46, %v26
    %v48 = vpop.permute.xlu0 %47
    %v50 = vadd.f32 %v44, %v48
    %v51 = vadd.f32 %v45, %v48
    %v52 = vmax.f32 %v38, %v50
    %v53 = vmax.f32 %v39, %v51
    %54 = vst [vmem:[#allocation5] sm:$0xff] %v52
    %55 = vst [vmem:[#allocation5 + $0x8] sm:$0xff] %v53
    // Predicated region
    $region14: #{tpu_custom_call.1} parent=1 // pred_check
      _
    $region15: #{tpu_custom_call.1} parent=1 // pred_check_branch
      %57 = sbr.rel (0) target = $region17
    $region16: #{tpu_custom_call.1} parent=1 // pred_region
      %s59 = ssub.s32 256, 256
      %60 = vsyncadd [#allocation4], %s59
      %s62 = sshll.u32 [#allocation5], 4
      %s63 = int_to_ptr.vmem [resolvable:$true] %s62
      %65 = dma.vmem_to_hbm [thread:$0]  %s63, 256, %s2, [#allocation4]
    $region17: #{tpu_custom_call.1} parent=1 // pred_fallthru
      _
    // Predicated region
    $region18: #{tpu_custom_call.1} parent=1 // pred_check
      _
    $region19: #{tpu_custom_call.1} parent=1 // pred_check_branch
      %67 = sbr.rel (0) target = $region21
    $region20: #{tpu_custom_call.1} parent=1 // pred_region
      %68 = dma.done [#allocation4], 256
    $region21: #{tpu_custom_call.1} parent=1 // pred_fallthru
      _
    %69 = vsyncpa [#allocation3], 1
    %70 = vsyncpa [#allocation4], 1

</llo_original>
